<compile_context>
chip_gen: v7x
topology: tpu7x:2x2x1
jax: 0.10.0
libtpu: 0.0.40
codegen_flags: <defaults>
</compile_context>

<pallas_src>
import math
import functools

import jax
import jax.numpy as jnp
from jax import lax
from jax.experimental import pallas as pl
from jax.experimental.pallas import tpu as pltpu


# ----------------------------------------------------------------------------
# Kernel bodies
# ----------------------------------------------------------------------------
def _softmax_attend(scores, v, o_ref):
    """Softmax over keys (last axis) + probability @ value matmul."""
    m = jnp.max(scores, axis=-1, keepdims=True)
    e = jnp.exp(scores - m)
    s = jnp.sum(e, axis=-1, keepdims=True)
    # EUP approximate reciprocal (free bundle slot) + one Newton refinement
    # keeps full f32 accuracy without a VALU divide.
    inv = pl.reciprocal(s, approx=True)
    inv = inv * (2.0 - s * inv)
    w = e * inv
    out = jnp.einsum("bqk,bkd->bqd", w.astype(v.dtype), v,
                     preferred_element_type=jnp.float32)
    o_ref[...] = out.astype(o_ref.dtype)


def _xattn_smem_kernel(vl_ref, q_ref, k_ref, v_ref, o_ref, *, scale, block_b):
    """Per-batch valid lengths (int32) read as scalars from SMEM."""
    # Batched scores; contraction over D directly (no k transpose materialized).
    scores = jnp.einsum("bqd,bkd->bqk", q_ref[...], k_ref[...],
                        preferred_element_type=jnp.float32) * scale
    _, q_len, k_len = scores.shape
    col = lax.broadcasted_iota(jnp.int32, (q_len, k_len), 1)
    b0 = pl.program_id(0) * block_b
    masked = []
    for i in range(block_b):                 # static unroll; block_b is small
        vl_i = vl_ref[b0 + i]                # scalar int32 SMEM read
        # SequenceMask(value=0): out-of-range scores become exactly 0 BEFORE the
        # ordinary softmax (matches the PyTorch reference; NOT -inf masking).
        masked.append(jnp.where(col < vl_i, scores[i], 0.0))
    scores = jnp.stack(masked, axis=0)
    _softmax_attend(scores, v_ref[...], o_ref)


def _xattn_mask_kernel(q_ref, k_ref, v_ref, mask_ref, o_ref, *, scale):
    """Per-(batch, query-row) lengths: lane-dense 0/1 mask built on host."""
    scores = jnp.einsum("bqd,bkd->bqk", q_ref[...], k_ref[...],
                        preferred_element_type=jnp.float32) * scale
    scores = scores * mask_ref[...]          # mask value 0 == SequenceMask(value=0)
    _softmax_attend(scores, v_ref[...], o_ref)


# ----------------------------------------------------------------------------
# Host-side wrapper
# ----------------------------------------------------------------------------
def _choose_block_batch(B, Q, K, D, Dv, itemsize, vmem_budget=8 * 1024 * 1024):
    """Largest divisor of B that fits the VMEM budget and keeps grid >= 2."""
    per_b = 2 * (Q * D + K * D + K * Dv + Q * Dv) * itemsize + 2 * Q * K * 4
    limit = B if B == 1 else max(1, B // 2)   # keep >= 2 grid steps (v7x: 2 TCs)
    best = 1
    for bb in range(1, limit + 1):
        if B % bb == 0 and bb * per_b <= vmem_budget:
            best = bb
    return best


def cross_attention(query, key, value, valid_length=None):
    """query: (B, Q, D), key: (B, K, D), value: (B, K, Dv)."""
    B, Q, D = query.shape
    _, K, _ = key.shape
    Dv = value.shape[-1]
    scale = 1.0 / math.sqrt(D)

    itemsize = jnp.dtype(query.dtype).itemsize
    block_b = _choose_block_batch(B, Q, K, D, Dv, itemsize)
    grid = (B // block_b,)
    params = pltpu.CompilerParams(dimension_semantics=("parallel",))

    if valid_length is not None and valid_length.ndim > 1:
        # Per-(batch, query-row) lengths: build a lane-dense (B, Q, K) 0/1 mask
        # on the host (rare path; keeps the kernel free of per-row scalar reads).
        vl = valid_length.astype(jnp.float32).reshape(B, Q)
        col = jnp.arange(K, dtype=jnp.float32)[None, None, :]
        mask = (col < vl[:, :, None]).astype(jnp.float32)
        kernel = functools.partial(_xattn_mask_kernel, scale=scale)
        return pl.pallas_call(
            kernel,
            out_shape=jax.ShapeDtypeStruct((B, Q, Dv), query.dtype),
            grid_spec=pltpu.PrefetchScalarGridSpec(
                num_scalar_prefetch=0,
                grid=grid,
                in_specs=[
                    pl.BlockSpec((block_b, Q, D), lambda b: (b, 0, 0)),
                    pl.BlockSpec((block_b, K, D), lambda b: (b, 0, 0)),
                    pl.BlockSpec((block_b, K, Dv), lambda b: (b, 0, 0)),
                    pl.BlockSpec((block_b, Q, K), lambda b: (b, 0, 0)),
                ],
                out_specs=pl.BlockSpec((block_b, Q, Dv), lambda b: (b, 0, 0)),
            ),
            compiler_params=params,
        )(query, key, value, mask)

    # Per-batch lengths (1-D valid_length) or None -> SMEM scalar prefetch.
    if valid_length is None:
        # TODO(synk): the valid_length=None branch of the reference uses legacy
        # nn.Softmax() which softmaxes a 3-D tensor over dim 0; not replicated
        # here -- we treat all keys as valid (softmax over the key axis).
        vl_i32 = jnp.full((B,), K, dtype=jnp.int32)
    else:
        # col < L for integer col is equivalent to col < ceil(L).
        vl_i32 = jnp.ceil(valid_length.astype(jnp.float32)).astype(jnp.int32)

    kernel = functools.partial(_xattn_smem_kernel, scale=scale, block_b=block_b)
    return pl.pallas_call(
        kernel,
        out_shape=jax.ShapeDtypeStruct((B, Q, Dv), query.dtype),
        grid_spec=pltpu.PrefetchScalarGridSpec(
            num_scalar_prefetch=1,
            grid=grid,
            in_specs=[
                pl.BlockSpec((block_b, Q, D), lambda b, vl: (b, 0, 0)),
                pl.BlockSpec((block_b, K, D), lambda b, vl: (b, 0, 0)),
                pl.BlockSpec((block_b, K, Dv), lambda b, vl: (b, 0, 0)),
            ],
            out_specs=pl.BlockSpec((block_b, Q, Dv), lambda b, vl: (b, 0, 0)),
        ),
        compiler_params=params,
    )(vl_i32, query, key, value)


# ----------------------------------------------------------------------------
# Demo / self-check
# ----------------------------------------------------------------------------
if __name__ == "__main__":
    B, Q, K, D, Dv = 8, 16, 16, 32, 32
    # NOTE: for real workloads prefer D/Dv multiples of 128 (lane-dense loads/
    # stores); small demo shapes kept consistent with the module's usage.

    root = jax.random.PRNGKey(0)
    kq, kk, kv = jax.random.split(root, 3)
    query = jax.random.normal(kq, (B, Q, D), dtype=jnp.float32)
    key = jax.random.normal(kk, (B, K, D), dtype=jnp.float32)
    value = jax.random.normal(kv, (B, K, Dv), dtype=jnp.float32)
    valid_length = jnp.array([3., 6., 9., 12., 16., 1., 5., 8.], dtype=jnp.float32)

    def ref_attn(q, k, v, vlen):
        scores = jnp.einsum("bqd,bkd->bqk", q, k) / math.sqrt(q.shape[-1])
        if vlen is not None:
            col = jnp.arange(k.shape[1], dtype=jnp.float32)[None, None, :]
            thr = vlen[:, None, None] if vlen.ndim == 1 else vlen[:, :, None]
            scores = jnp.where(col < thr, scores, 0.0)
        w = jax.nn.softmax(scores, axis=-1)
        return jnp.einsum("bqk,bkd->bqd", w, v)

    # 1-D (per-batch) valid_length path (SMEM scalar prefetch)
    out = jax.block_until_ready(cross_attention(query, key, value, valid_length))
    ref = ref_attn(query, key, value, valid_length)
    assert out.shape == (B, Q, Dv)
    assert jnp.allclose(out, ref, atol=2e-3, rtol=2e-3), "1-D valid_length mismatch"

    # 2-D (per query-row) valid_length path (host-built 0/1 mask)
    vl2 = jnp.clip(
        jnp.broadcast_to(valid_length[:, None], (B, Q))
        - (jnp.arange(Q, dtype=jnp.float32)[None, :] % 4.0),
        1.0, float(K))
    out2 = jax.block_until_ready(cross_attention(query, key, value, vl2))
    ref2 = ref_attn(query, key, value, vl2)
    assert jnp.allclose(out2, ref2, atol=2e-3, rtol=2e-3), "2-D valid_length mismatch"

    # valid_length=None path (all keys valid; see TODO about legacy softmax)
    out3 = jax.block_until_ready(cross_attention(query, key, value, None))
    ref3 = ref_attn(query, key, value, None)
    assert jnp.allclose(out3, ref3, atol=2e-3, rtol=2e-3), "None valid_length mismatch"

    print("KERNEL_OK")
</pallas_src>

<mosaic_0001>
module attributes {stable_mosaic.version = 11 : i64} {
  func.func @_xattn_smem_kernel(%arg0: i32, %arg1: memref<8xi32, #tpu.memory_space<smem>>, %arg2: memref<4x16x32xf32, #tpu.memory_space<vmem>>, %arg3: memref<4x16x32xf32, #tpu.memory_space<vmem>>, %arg4: memref<4x16x32xf32, #tpu.memory_space<vmem>>, %arg5: memref<4x16x32xf32, #tpu.memory_space<vmem>>) attributes {dimension_semantics = [#tpu.dimension_semantics<parallel>], iteration_bounds = array<i64: 2>, scalar_prefetch = 1 : i64, scratch_operands = 0 : i64, tpu.core_type = #tpu.core_type<tc>, window_params = [{transform_indices = @transform_0, window_bounds = array<i64: 4, 16, 32>}, {transform_indices = @transform_1, window_bounds = array<i64: 4, 16, 32>}, {transform_indices = @transform_2, window_bounds = array<i64: 4, 16, 32>}, {transform_indices = @transform_3, window_bounds = array<i64: 4, 16, 32>}]} {
    %c0 = arith.constant 0 : index
    %c0_0 = arith.constant 0 : index
    %c0_1 = arith.constant 0 : index
    %0 = vector.load %arg2[%c0, %c0_0, %c0_1] : memref<4x16x32xf32, #tpu.memory_space<vmem>>, vector<4x16x32xf32>
    %c0_2 = arith.constant 0 : index
    %c0_3 = arith.constant 0 : index
    %c0_4 = arith.constant 0 : index
    %1 = vector.load %arg3[%c0_2, %c0_3, %c0_4] : memref<4x16x32xf32, #tpu.memory_space<vmem>>, vector<4x16x32xf32>
    "tpu.trace_start"() <{level = 10 : i32, message = "bqd,bkd->bqk"}> : () -> ()
    %cst = arith.constant dense<0.000000e+00> : vector<4x16x16xf32>
    %2 = tpu.matmul %0, %1, %cst {dimension_numbers = #tpu.dot_dimension_numbers<[2], [2], [1], [1], [0, 0, 0, 1, 1, 1], [0], [0]>} : vector<4x16x32xf32>, vector<4x16x32xf32>, vector<4x16x16xf32> -> vector<4x16x16xf32>
    "tpu.trace_stop"() : () -> ()
    %cst_5 = arith.constant 0.176776692 : f32
    %3 = vector.broadcast %cst_5 : f32 to vector<4x16x16xf32>
    %4 = arith.mulf %2, %3 : vector<4x16x16xf32>
    %5 = tpu.iota {dimensions = array<i32: 1>} : vector<16x16xi32>
    %c4_i32 = arith.constant 4 : i32
    %6 = arith.muli %arg0, %c4_i32 : i32
    %c0_i32 = arith.constant 0 : i32
    %7 = arith.addi %6, %c0_i32 : i32
    %8 = arith.index_cast %7 : i32 to index
    %9 = memref.load %arg1[%8] : memref<8xi32, #tpu.memory_space<smem>>
    %10 = vector.broadcast %9 : i32 to vector<16x16xi32>
    %11 = arith.cmpi slt, %5, %10 : vector<16x16xi32>
    %12 = vector.extract_strided_slice %4 {offsets = [0, 0, 0], sizes = [1, 16, 16], strides = [1, 1, 1]} : vector<4x16x16xf32> to vector<1x16x16xf32>
    %13 = vector.shape_cast %12 : vector<1x16x16xf32> to vector<16x16xf32>
    %cst_6 = arith.constant 0.000000e+00 : f32
    %14 = vector.broadcast %cst_6 : f32 to vector<16x16xf32>
    %15 = arith.select %11, %13, %14 : vector<16x16xi1>, vector<16x16xf32>
    %c1_i32 = arith.constant 1 : i32
    %16 = arith.addi %6, %c1_i32 : i32
    %17 = arith.index_cast %16 : i32 to index
    %18 = memref.load %arg1[%17] : memref<8xi32, #tpu.memory_space<smem>>
    %19 = vector.broadcast %18 : i32 to vector<16x16xi32>
    %20 = arith.cmpi slt, %5, %19 : vector<16x16xi32>
    %21 = vector.extract_strided_slice %4 {offsets = [1, 0, 0], sizes = [1, 16, 16], strides = [1, 1, 1]} : vector<4x16x16xf32> to vector<1x16x16xf32>
    %22 = vector.shape_cast %21 : vector<1x16x16xf32> to vector<16x16xf32>
    %cst_7 = arith.constant 0.000000e+00 : f32
    %23 = vector.broadcast %cst_7 : f32 to vector<16x16xf32>
    %24 = arith.select %20, %22, %23 : vector<16x16xi1>, vector<16x16xf32>
    %c2_i32 = arith.constant 2 : i32
    %25 = arith.addi %6, %c2_i32 : i32
    %26 = arith.index_cast %25 : i32 to index
    %27 = memref.load %arg1[%26] : memref<8xi32, #tpu.memory_space<smem>>
    %28 = vector.broadcast %27 : i32 to vector<16x16xi32>
    %29 = arith.cmpi slt, %5, %28 : vector<16x16xi32>
    %30 = vector.extract_strided_slice %4 {offsets = [2, 0, 0], sizes = [1, 16, 16], strides = [1, 1, 1]} : vector<4x16x16xf32> to vector<1x16x16xf32>
    %31 = vector.shape_cast %30 : vector<1x16x16xf32> to vector<16x16xf32>
    %cst_8 = arith.constant 0.000000e+00 : f32
    %32 = vector.broadcast %cst_8 : f32 to vector<16x16xf32>
    %33 = arith.select %29, %31, %32 : vector<16x16xi1>, vector<16x16xf32>
    %c3_i32 = arith.constant 3 : i32
    %34 = arith.addi %6, %c3_i32 : i32
    %35 = arith.index_cast %34 : i32 to index
    %36 = memref.load %arg1[%35] : memref<8xi32, #tpu.memory_space<smem>>
    %37 = vector.broadcast %36 : i32 to vector<16x16xi32>
    %38 = arith.cmpi slt, %5, %37 : vector<16x16xi32>
    %39 = vector.extract_strided_slice %4 {offsets = [3, 0, 0], sizes = [1, 16, 16], strides = [1, 1, 1]} : vector<4x16x16xf32> to vector<1x16x16xf32>
    %40 = vector.shape_cast %39 : vector<1x16x16xf32> to vector<16x16xf32>
    %cst_9 = arith.constant 0.000000e+00 : f32
    %41 = vector.broadcast %cst_9 : f32 to vector<16x16xf32>
    %42 = arith.select %38, %40, %41 : vector<16x16xi1>, vector<16x16xf32>
    %43 = vector.shape_cast %15 : vector<16x16xf32> to vector<1x16x16xf32>
    %44 = vector.shape_cast %24 : vector<16x16xf32> to vector<1x16x16xf32>
    %45 = vector.shape_cast %33 : vector<16x16xf32> to vector<1x16x16xf32>
    %46 = vector.shape_cast %42 : vector<16x16xf32> to vector<1x16x16xf32>
    %47 = tpu.concatenate %43, %44, %45, %46 in 0 : vector<1x16x16xf32>, vector<1x16x16xf32>, vector<1x16x16xf32>, vector<1x16x16xf32> -> vector<4x16x16xf32>
    %c0_10 = arith.constant 0 : index
    %c0_11 = arith.constant 0 : index
    %c0_12 = arith.constant 0 : index
    %48 = vector.load %arg4[%c0_10, %c0_11, %c0_12] : memref<4x16x32xf32, #tpu.memory_space<vmem>>, vector<4x16x32xf32>
    %cst_13 = arith.constant dense<0xFF800000> : vector<4x16xf32>
    %49 = vector.multi_reduction <maximumf>, %47, %cst_13 [2] : vector<4x16x16xf32> to vector<4x16xf32>
    %50 = vector.shape_cast %49 : vector<4x16xf32> to vector<4x16x1xf32>
    %51 = vector.broadcast %50 : vector<4x16x1xf32> to vector<4x16x16xf32>
    %52 = arith.subf %47, %51 : vector<4x16x16xf32>
    %53 = math.exp %52 : vector<4x16x16xf32>
    %cst_14 = arith.constant dense<0.000000e+00> : vector<4x16xf32>
    %54 = vector.multi_reduction <add>, %53, %cst_14 [2] : vector<4x16x16xf32> to vector<4x16xf32>
    %55 = vector.shape_cast %54 : vector<4x16xf32> to vector<4x16x1xf32>
    %56 = tpu.reciprocal %55 {approx = true} : vector<4x16x1xf32> -> vector<4x16x1xf32>
    %57 = arith.mulf %55, %56 : vector<4x16x1xf32>
    %cst_15 = arith.constant 2.000000e+00 : f32
    %58 = vector.broadcast %cst_15 : f32 to vector<4x16x1xf32>
    %59 = arith.subf %58, %57 : vector<4x16x1xf32>
    %60 = arith.mulf %56, %59 : vector<4x16x1xf32>
    %61 = vector.broadcast %60 : vector<4x16x1xf32> to vector<4x16x16xf32>
    %62 = arith.mulf %53, %61 : vector<4x16x16xf32>
    "tpu.trace_start"() <{level = 10 : i32, message = "bqk,bkd->bqd"}> : () -> ()
    %cst_16 = arith.constant dense<0.000000e+00> : vector<4x16x32xf32>
    %63 = tpu.matmul %62, %48, %cst_16 {dimension_numbers = #tpu.dot_dimension_numbers<[2], [1], [1], [2], [0, 0, 0, 1, 1, 2], [0], [0]>} : vector<4x16x16xf32>, vector<4x16x32xf32>, vector<4x16x32xf32> -> vector<4x16x32xf32>
    "tpu.trace_stop"() : () -> ()
    %c0_17 = arith.constant 0 : index
    %c0_18 = arith.constant 0 : index
    %c0_19 = arith.constant 0 : index
    %64 = vector.load %arg5[%c0_17, %c0_18, %c0_19] : memref<4x16x32xf32, #tpu.memory_space<vmem>>, vector<4x16x32xf32>
    tpu.vector_store %arg5[%c0_17, %c0_18, %c0_19], %63 {strides = array<i32>} : memref<4x16x32xf32, #tpu.memory_space<vmem>>, vector<4x16x32xf32>,
    return
  }
  func.func @transform_0(%arg0: i32, %arg1: memref<8xi32, #tpu.memory_space<smem>>) -> (i32, i32, i32) {
    %c0_i32 = arith.constant 0 : i32
    %c0_i32_0 = arith.constant 0 : i32
    %c0_i32_1 = arith.constant 0 : i32
    return %arg0, %c0_i32, %c0_i32_0 : i32, i32, i32
  }
  func.func @transform_1(%arg0: i32, %arg1: memref<8xi32, #tpu.memory_space<smem>>) -> (i32, i32, i32) {
    %c0_i32 = arith.constant 0 : i32
    %c0_i32_0 = arith.constant 0 : i32
    %c0_i32_1 = arith.constant 0 : i32
    return %arg0, %c0_i32, %c0_i32_0 : i32, i32, i32
  }
  func.func @transform_2(%arg0: i32, %arg1: memref<8xi32, #tpu.memory_space<smem>>) -> (i32, i32, i32) {
    %c0_i32 = arith.constant 0 : i32
    %c0_i32_0 = arith.constant 0 : i32
    %c0_i32_1 = arith.constant 0 : i32
    return %arg0, %c0_i32, %c0_i32_0 : i32, i32, i32
  }
  func.func @transform_3(%arg0: i32, %arg1: memref<8xi32, #tpu.memory_space<smem>>) -> (i32, i32, i32) {
    %c0_i32 = arith.constant 0 : i32
    %c0_i32_0 = arith.constant 0 : i32
    %c0_i32_1 = arith.constant 0 : i32
    return %arg0, %c0_i32, %c0_i32_0 : i32, i32, i32
  }
}

</mosaic_0001>

<llo_original>
// kernel: tpu_custom_call.1
$region0: #{tpu_custom_call.1}
  #allocation0 [shape = 'u32[]', space=smem, size = 0x4, offset = 0x4, fixed_abs, tag = 'smem constant byte address 0x4 - core index']
  #allocation1 [shape = 'u32[144,128]{1,0:T(1,128)}', space=vmem, size = 0x12000, scoped, tag = 'internal scratch']
  #allocation2 [shape = 's32[1]{0}', space=sflag, size = 0x4, scoped, tag = 'scoped memory for tpu_custom_call.1']
  #allocation3 [shape = 'u8[512]{0}', space=smem, size = 0x200, scoped, tag = 'prefetched SMEM operand 0']
  %s0 = inlined_call_operand.hbm [shape: s32[8], index: 0, kind: input, shape index: {}]
  %s1 = inlined_call_operand.hbm [shape: f32[8,16,32], index: 1, kind: input, shape index: {}]
  %s2 = inlined_call_operand.hbm [shape: f32[8,16,32], index: 2, kind: input, shape index: {}]
  %s3 = inlined_call_operand.hbm [shape: f32[8,16,32], index: 3, kind: input, shape index: {}]
  %s4 = inlined_call_operand.hbm [shape: f32[8,16,32], index: 4, kind: output, shape index: {}]
  %s5 = sld [smem:[#allocation0]]
  $region57: #{tpu_custom_call.1} parent=0
    _
  %s7 = ssub.s32 1, %s5
  %s8 = scalar_select 0, %s7, %s5
  %10 = dma.hbm_to_smem %s0, 16, [#allocation3], [#allocation2]
  %11 = dma.done [#allocation2], 16
  %12 = sfence
  $region1: #{tpu_custom_call.1} parent=0
    #allocation4 [shape = 'u8[65536]{0}', space=vmem, size = 0x10000, scoped, tag = 'input window, operand 1']
    #allocation5 [shape = 's32[2]{0}', space=sflag, size = 0x8, scoped, tag = 'scoped memory for tpu_custom_call.1']
    #allocation6 [shape = 's32[2]{0}', space=sflag, size = 0x8, scoped, tag = 'scoped memory for tpu_custom_call.1']
    #allocation7 [shape = 'u8[65536]{0}', space=vmem, size = 0x10000, scoped, tag = 'input window, operand 2']
    #allocation8 [shape = 's32[2]{0}', space=sflag, size = 0x8, scoped, tag = 'scoped memory for tpu_custom_call.1']
    #allocation9 [shape = 'u8[65536]{0}', space=vmem, size = 0x10000, scoped, tag = 'input window, operand 3']
    #allocation10 [shape = 'u8[65536]{0}', space=vmem, size = 0x10000, scoped, tag = 'output window, operand 0']
    %13 = vsyncpa [#allocation5], 0
    %s14 = scalar_lea.sflag [#allocation5], 1
    %15 = vsyncpa %s14, 0
    %16 = vsyncpa [#allocation8], 0
    %s17 = scalar_lea.sflag [#allocation8], 1
    %18 = vsyncpa %s17, 0
    %19 = vsyncpa [#allocation6], 0
    %s20 = scalar_lea.sflag [#allocation6], 1
    %21 = vsyncpa %s20, 0
    loop: start=0, step=1, limit=4
    $region2: #{tpu_custom_call.1} parent=1 // loop_pre_header
      _
    $region3: #{tpu_custom_call.1} parent=1 // loop_header
      %s23 = sphi 0, %s27
      %p24 = scmp.ge.s32.totalorder %s23, 4
      %s33 = sphi 0, %s35
      %s36 = sphi 0, %s33
      %s37 = sphi 0, %s36
      %s53 = sphi 0, %s37
      %s59 = sphi 0, %s61
      %s62 = sphi 0, %s59
      %s63 = sphi 0, %s62
      %s79 = sphi 0, %s63
      %s85 = sphi 0, %s87
      %s88 = sphi 0, %s85
      %s89 = sphi 0, %s88
      %s105 = sphi 0, %s89
      %s111 = sphi 0, %s113
      %s114 = sphi 0, %s111
      %s115 = sphi 0, %s114
      %s131 = sphi 0, %s115
    $region4: #{tpu_custom_call.1} parent=1 // loop_header_branch
      %26 = sbr.rel (%p24) target = $region8
    $region5: #{tpu_custom_call.1} parent=1 // loop_body
      %s28 = ssub.s32 %s23, 1
      %s29 = ssub.s32 %s23, 2
      %s30 = sadd.s32 %s23, 1
      %s31 = ssub.s32 %s23, %s30
      %p32 = scmp.eq.s32.totalorder %s31, 0
      %s34 = sadd.s32 %s33, 1
      %s35 = scalar_select %p32, %s33, %s34
      %p38 = pneg %p32
      %p39 = scmp.eq.s32.totalorder %s23, 1
      %p40 = por %p38, %p39
      %p41 = scmp.ne.s32.totalorder %s33, %s36
      %p42 = scmp.eq.s32.totalorder %s23, 0
      %p43 = por %p41, %p42
      %p44 = scmp.ne.s32.totalorder %s33, %s36
      %p45 = scmp.eq.s32.totalorder %s28, 1
      %p46 = por %p44, %p45
      %p47 = scmp.ne.s32.totalorder %s36, %s37
      %p48 = scmp.eq.s32.totalorder %s28, 0
      %p49 = por %p47, %p48
      %p50 = scmp.ne.s32.totalorder %s36, %s37
      %p51 = scmp.eq.s32.totalorder %s29, 1
      %p52 = por %p50, %p51
      %p54 = scmp.ne.s32.totalorder %s37, %s53
      %p55 = scmp.eq.s32.totalorder %s29, 0
      %p56 = por %p54, %p55
      %s57 = ssub.s32 %s23, %s30
      %p58 = scmp.eq.s32.totalorder %s57, 0
      %s60 = sadd.s32 %s59, 1
      %s61 = scalar_select %p58, %s59, %s60
      %p64 = pneg %p58
      %p65 = scmp.eq.s32.totalorder %s23, 1
      %p66 = por %p64, %p65
      %p67 = scmp.ne.s32.totalorder %s59, %s62
      %p68 = scmp.eq.s32.totalorder %s23, 0
      %p69 = por %p67, %p68
      %p70 = scmp.ne.s32.totalorder %s59, %s62
      %p71 = scmp.eq.s32.totalorder %s28, 1
      %p72 = por %p70, %p71
      %p73 = scmp.ne.s32.totalorder %s62, %s63
      %p74 = scmp.eq.s32.totalorder %s28, 0
      %p75 = por %p73, %p74
      %p76 = scmp.ne.s32.totalorder %s62, %s63
      %p77 = scmp.eq.s32.totalorder %s29, 1
      %p78 = por %p76, %p77
      %p80 = scmp.ne.s32.totalorder %s63, %s79
      %p81 = scmp.eq.s32.totalorder %s29, 0
      %p82 = por %p80, %p81
      %s83 = ssub.s32 %s23, %s30
      %p84 = scmp.eq.s32.totalorder %s83, 0
      %s86 = sadd.s32 %s85, 1
      %s87 = scalar_select %p84, %s85, %s86
      %p90 = pneg %p84
      %p91 = scmp.eq.s32.totalorder %s23, 1
      %p92 = por %p90, %p91
      %p93 = scmp.ne.s32.totalorder %s85, %s88
      %p94 = scmp.eq.s32.totalorder %s23, 0
      %p95 = por %p93, %p94
      %p96 = scmp.ne.s32.totalorder %s85, %s88
      %p97 = scmp.eq.s32.totalorder %s28, 1
      %p98 = por %p96, %p97
      %p99 = scmp.ne.s32.totalorder %s88, %s89
      %p100 = scmp.eq.s32.totalorder %s28, 0
      %p101 = por %p99, %p100
      %p102 = scmp.ne.s32.totalorder %s88, %s89
      %p103 = scmp.eq.s32.totalorder %s29, 1
      %p104 = por %p102, %p103
      %p106 = scmp.ne.s32.totalorder %s89, %s105
      %p107 = scmp.eq.s32.totalorder %s29, 0
      %p108 = por %p106, %p107
      %s109 = ssub.s32 %s23, %s30
      %p110 = scmp.eq.s32.totalorder %s109, 0
      %s112 = sadd.s32 %s111, 1
      %s113 = scalar_select %p110, %s111, %s112
      %p116 = pneg %p110
      %p117 = scmp.eq.s32.totalorder %s23, 1
      %p118 = por %p116, %p117
      %p119 = scmp.ne.s32.totalorder %s111, %s114
      %p120 = scmp.eq.s32.totalorder %s23, 0
      %p121 = por %p119, %p120
      %p122 = scmp.ne.s32.totalorder %s111, %s114
      %p123 = scmp.eq.s32.totalorder %s28, 1
      %p124 = por %p122, %p123
      %p125 = scmp.ne.s32.totalorder %s114, %s115
      %p126 = scmp.eq.s32.totalorder %s28, 0
      %p127 = por %p125, %p126
      %p128 = scmp.ne.s32.totalorder %s114, %s115
      %p129 = scmp.eq.s32.totalorder %s29, 1
      %p130 = por %p128, %p129
      %p132 = scmp.ne.s32.totalorder %s115, %s131
      %p133 = scmp.eq.s32.totalorder %s29, 0
      %p134 = por %p132, %p133
      %p135 = scmp.le.s32.totalorder 1, %s23
      %p136 = scmp.lt.s32.totalorder %s23, 3
      %p137 = pnand %p135, %p136
      %p138 = pneg %p137
      // Predicated region
      $region9: #{tpu_custom_call.1} parent=5 // pred_check
        _
      $region10: #{tpu_custom_call.1} parent=5 // pred_check_branch
        %140 = sbr.rel (%p137) target = $region12
      $region11: #{tpu_custom_call.1} parent=5 // pred_region
        %s141 = ssub.s32 %s23, 1
      $region12: #{tpu_custom_call.1} parent=5 // pred_fallthru
        _
      %p142 = scmp.lt.s32.totalorder %s23, 2
      // Predicated region
      $region13: #{tpu_custom_call.1} parent=5 // pred_check
        %p143 = pneg %p142
      $region14: #{tpu_custom_call.1} parent=5 // pred_check_branch
        %145 = sbr.rel (%p143) target = $region16
      $region15: #{tpu_custom_call.1} parent=5 // pred_region
        // Predicated region
        $region17: #{tpu_custom_call.1} parent=15 // pred_check
          %p146 = pneg %p43
        $region18: #{tpu_custom_call.1} parent=15 // pred_check_branch
          %148 = sbr.rel (%p146) target = $region20
        $region19: #{tpu_custom_call.1} parent=15 // pred_region
          %s149 = sand.u32 %s33, 1
          %s150 = scalar_lea.sflag [#allocation5], %s149
          %s151 = sand.u32 %s33, 1
          %s152 = smul.addr %s151, 64
          %s153 = scalar_lea.vmem [#allocation4], %s152
          %s154 = smul.u32 4, %s23
          %s156 = ssub.s32 1024, 1024
          %157 = vsyncadd %s150, %s156
          %s158 = smul.addr %s154, 2
          %s159 = smul.addr %s158, 128
          %s160 = scalar_lea.hbm %s1, %s159
          %s161 = sshll.u32 %s153, 4
          %s162 = int_to_ptr.vmem [resolvable:$true] %s161
          %167 = dma.hbm_to_vmem [thread:$0]  %s160, 1024, %s162, %s150, 128, 128, 8
        $region20: #{tpu_custom_call.1} parent=15 // pred_fallthru
          _
        // Predicated region
        $region21: #{tpu_custom_call.1} parent=15 // pred_check
          %p168 = pneg %p69
        $region22: #{tpu_custom_call.1} parent=15 // pred_check_branch
          %170 = sbr.rel (%p168) target = $region24
        $region23: #{tpu_custom_call.1} parent=15 // pred_region
          %s171 = sand.u32 %s23, 1
          %s172 = scalar_lea.sflag [#allocation8], %s171
          %s173 = sand.u32 %s59, 1
          %s174 = smul.addr %s173, 64
          %s175 = scalar_lea.vmem [#allocation7], %s174
          %s176 = smul.u32 4, %s23
          %s178 = ssub.s32 1024, 1024
          %179 = vsyncadd %s172, %s178
          %s180 = smul.addr %s176, 2
          %s181 = smul.addr %s180, 128
          %s182 = scalar_lea.hbm %s2, %s181
          %s183 = sshll.u32 %s175, 4
          %s184 = int_to_ptr.vmem [resolvable:$true] %s183
          %189 = dma.hbm_to_vmem [thread:$0]  %s182, 1024, %s184, %s172, 128, 128, 8
        $region24: #{tpu_custom_call.1} parent=15 // pred_fallthru
          _
        // Predicated region
        $region25: #{tpu_custom_call.1} parent=15 // pred_check
          %p190 = pneg %p95
        $region26: #{tpu_custom_call.1} parent=15 // pred_check_branch
          %192 = sbr.rel (%p190) target = $region28
        $region27: #{tpu_custom_call.1} parent=15 // pred_region
          %s193 = sand.u32 %s23, 1
          %s194 = scalar_lea.sflag [#allocation8], %s193
          %s195 = sand.u32 %s85, 1
          %s196 = smul.addr %s195, 64
          %s197 = scalar_lea.vmem [#allocation9], %s196
          %s198 = smul.u32 4, %s23
          %s200 = ssub.s32 1024, 1024
          %201 = vsyncadd %s194, %s200
          %s202 = smul.addr %s198, 2
          %s203 = smul.addr %s202, 128
          %s204 = scalar_lea.hbm %s3, %s203
          %s205 = sshll.u32 %s197, 4
          %s206 = int_to_ptr.vmem [resolvable:$true] %s205
          %211 = dma.hbm_to_vmem [thread:$0]  %s204, 1024, %s206, %s194, 128, 128, 8
        $region28: #{tpu_custom_call.1} parent=15 // pred_fallthru
          _
      $region16: #{tpu_custom_call.1} parent=5 // pred_fallthru
        _
      %p212 = scmp.le.s32.totalorder 1, %s23
      %p213 = scmp.lt.s32.totalorder %s23, 3
      %p214 = pnand %p212, %p213
      %p215 = pneg %p214
      // Predicated region
      $region29: #{tpu_custom_call.1} parent=5 // pred_check
        _
      $region30: #{tpu_custom_call.1} parent=5 // pred_check_branch
        %217 = sbr.rel (%p214) target = $region32
      $region31: #{tpu_custom_call.1} parent=5 // pred_region
        %s218 = ssub.s32 %s23, 1
        %s219 = sand.u32 %s36, 1
        %s220 = scalar_lea.sflag [#allocation5], %s219
        %s221 = sand.u32 %s36, 1
        %s222 = smul.addr %s221, 64
        %s223 = scalar_lea.vmem [#allocation4], %s222
        // Predicated region
        $region33: #{tpu_custom_call.1} parent=31 // pred_check
          %p224 = pneg %p49
        $region34: #{tpu_custom_call.1} parent=31 // pred_check_branch
          %226 = sbr.rel (%p224) target = $region36
        $region35: #{tpu_custom_call.1} parent=31 // pred_region
          %227 = dma.done %s220, 1024
        $region36: #{tpu_custom_call.1} parent=31 // pred_fallthru
          _
        %s228 = sand.u32 %s28, 1
        %s229 = scalar_lea.sflag [#allocation8], %s228
        %s230 = sand.u32 %s62, 1
        %s231 = smul.addr %s230, 64
        %s232 = scalar_lea.vmem [#allocation7], %s231
        // Predicated region
        $region37: #{tpu_custom_call.1} parent=31 // pred_check
          %p233 = pneg %p75
        $region38: #{tpu_custom_call.1} parent=31 // pred_check_branch
          %235 = sbr.rel (%p233) target = $region40
        $region39: #{tpu_custom_call.1} parent=31 // pred_region
          %236 = dma.done %s229, 1024
        $region40: #{tpu_custom_call.1} parent=31 // pred_fallthru
          _
        %s237 = sand.u32 %s28, 1
        %s238 = scalar_lea.sflag [#allocation8], %s237
        %s239 = sand.u32 %s88, 1
        %s240 = smul.addr %s239, 64
        %s241 = scalar_lea.vmem [#allocation9], %s240
        // Predicated region
        $region41: #{tpu_custom_call.1} parent=31 // pred_check
          %p242 = pneg %p101
        $region42: #{tpu_custom_call.1} parent=31 // pred_check_branch
          %244 = sbr.rel (%p242) target = $region44
        $region43: #{tpu_custom_call.1} parent=31 // pred_region
          %245 = dma.done %s238, 1024
        $region44: #{tpu_custom_call.1} parent=31 // pred_fallthru
          _
        %s246 = sand.u32 %s36, 1
        %s247 = scalar_lea.sflag [#allocation5], %s246
        %s248 = sand.u32 %s36, 1
        %s249 = smul.addr %s248, 64
        %s250 = scalar_lea.vmem [#allocation4], %s249
        %p251 = pneg %p49
        %p252 = pneg %p46
        %s253 = sand.u32 %s28, 1
        %s254 = scalar_lea.sflag [#allocation8], %s253
        %s255 = sand.u32 %s62, 1
        %s256 = smul.addr %s255, 64
        %s257 = scalar_lea.vmem [#allocation7], %s256
        %p258 = pneg %p75
        %p259 = pneg %p72
        %s260 = sand.u32 %s28, 1
        %s261 = scalar_lea.sflag [#allocation8], %s260
        %s262 = sand.u32 %s88, 1
        %s263 = smul.addr %s262, 64
        %s264 = scalar_lea.vmem [#allocation9], %s263
        %p265 = pneg %p101
        %p266 = pneg %p98
        %p267 = pneg %p127
        %p268 = pneg %p124
        %s269 = sand.u32 %s114, 1
        %s270 = scalar_lea.sflag [#allocation6], %s269
        %s271 = sand.u32 %s114, 1
        %s272 = smul.addr %s271, 64
        %s273 = scalar_lea.vmem [#allocation10], %s272
        %s274 = smul.u32 4, %s28
        %s275 = smul.u32 4, %s28
        %s276 = smul.u32 4, %s28
        %s277 = smul.u32 4, %s28
        %v278 = vld [vmem:[%s223] sm:$0xff]
        %v279 = vld [vmem:[%s223 + $0x8] sm:$0xff]
        %v280 = vld [vmem:[%s223 + $0x10] sm:$0xff]
        %v281 = vld [vmem:[%s223 + $0x18] sm:$0xff]
        %v282 = vld [vmem:[%s223 + $0x20] sm:$0xff]
        %v283 = vld [vmem:[%s223 + $0x28] sm:$0xff]
        %v284 = vld [vmem:[%s223 + $0x30] sm:$0xff]
        %v285 = vld [vmem:[%s223 + $0x38] sm:$0xff]
        %v286 = vld [vmem:[%s232] sm:$0xff]
        %v287 = vld [vmem:[%s232 + $0x8] sm:$0xff]
        %v288 = vld [vmem:[%s232 + $0x10] sm:$0xff]
        %v289 = vld [vmem:[%s232 + $0x18] sm:$0xff]
        %v290 = vld [vmem:[%s232 + $0x20] sm:$0xff]
        %v291 = vld [vmem:[%s232 + $0x28] sm:$0xff]
        %v292 = vld [vmem:[%s232 + $0x30] sm:$0xff]
        %v293 = vld [vmem:[%s232 + $0x38] sm:$0xff]
        %vm294 = vcmask 261120
        %v296 = vsel %vm294, %v278, 0
        %v299 = vsel %vm294, %v279, 0
        %v302 = vsel %vm294, %v286, 0
        %v305 = vsel %vm294, %v287, 0
        %307 = vmatprep.subr.mxu0 0.0
        %308 = vmatpush1.xpose.msra.mxu0 %v302
        %309 = vmatprep.subr.mxu0 0.0
        %310 = vmatpush1.xpose.msra.mxu0 %v305
        %311 = vmatprep.subr.mxu0 0.0
        %312 = vmatpush1.xpose.msra.mxu0 0.0
        %313 = vmatprep.subr.mxu0 0.0
        %314 = vmatpush1.xpose.msra.mxu0 0.0
        %315 = vmatprep.subr.mxu0 0.0
        %316 = vmatpush1.xpose.msra.mxu0 0.0
        %317 = vmatprep.subr.mxu0 0.0
        %318 = vmatpush1.xpose.msra.mxu0 0.0
        %319 = vmatprep.subr.mxu0 0.0
        %320 = vmatpush1.xpose.msra.mxu0 0.0
        %321 = vmatprep.subr.mxu0 0.0
        %322 = vmatpush1.xpose.msra.mxu0 0.0
        %323 = vmatprep.subr.mxu0 0.0
        %324 = vmatpush1.xpose.msra.mxu0 0.0
        %325 = vmatprep.subr.mxu0 0.0
        %326 = vmatpush1.xpose.msra.mxu0 0.0
        %327 = vmatprep.subr.mxu0 0.0
        %328 = vmatpush1.xpose.msra.mxu0 0.0
        %329 = vmatprep.subr.mxu0 0.0
        %330 = vmatpush1.xpose.msra.mxu0 0.0
        %331 = vmatprep.subr.mxu0 0.0
        %332 = vmatpush1.xpose.msra.mxu0 0.0
        %333 = vmatprep.subr.mxu0 0.0
        %334 = vmatpush1.xpose.msra.mxu0 0.0
        %335 = vmatprep.subr.mxu0 0.0
        %336 = vmatpush1.xpose.msra.mxu0 0.0
        %337 = vmatprep.subr.mxu0 0.0
        %338 = vmatpush1.xpose.msra.mxu0 0.0
        %339 = vmatprep.subr.mxu0 0.0
        %340 = vmatpush1.xpose.msra.mxu0 0.0
        %341 = vmatprep.subr.mxu0 0.0
        %342 = vmatpush1.xpose.msra.mxu0 0.0
        %343 = vmatprep.subr.mxu0 0.0
        %344 = vmatpush1.xpose.msra.mxu0 0.0
        %345 = vmatprep.subr.mxu0 0.0
        %346 = vmatpush1.xpose.msra.mxu0 0.0
        %347 = vmatprep.subr.mxu0 0.0
        %348 = vmatpush1.xpose.msra.mxu0 0.0
        %349 = vmatprep.subr.mxu0 0.0
        %350 = vmatpush1.xpose.msra.mxu0 0.0
        %351 = vmatprep.subr.mxu0 0.0
        %352 = vmatpush1.xpose.msra.mxu0 0.0
        %353 = vmatprep.subr.mxu0 0.0
        %354 = vmatpush1.xpose.msra.mxu0 0.0
        %355 = vmatprep.subr.mxu0 0.0
        %356 = vmatpush1.xpose.msra.mxu0 0.0
        %357 = vmatprep.subr.mxu0 0.0
        %358 = vmatpush1.xpose.msra.mxu0 0.0
        %359 = vmatprep.subr.mxu0 0.0
        %360 = vmatpush1.xpose.msra.mxu0 0.0
        %361 = vmatprep.subr.mxu0 0.0
        %362 = vmatpush1.xpose.msra.mxu0 0.0
        %363 = vmatprep.subr.mxu0 0.0
        %364 = vmatpush1.xpose.msra.mxu0 0.0
        %365 = vmatprep.subr.mxu0 0.0
        %366 = vmatpush1.xpose.msra.mxu0 0.0
        %367 = vmatprep.subr.mxu0 0.0
        %368 = vmatpush1.xpose.msra.mxu0 0.0
        %369 = vmatprep.subr.mxu0 0.0
        %370 = vmatpush1.xpose.msra.mxu0 0.0
        %371 = vmatprep.mubr.f32.mxu0 0.0
        %372 = vmatmul.mubr.f32.gmra.mrb[0].mxu0 %v296
        %v373 = vpop.f32.mrb[0].mxu0
        %v374 = vadd.f32 0.0, %v373
        %v375 = vpop.f32.mrb[0].mxu0
        %376 = vmatprep.mubr.f32.mxu0 0.0
        %377 = vmatmul.mubr.f32.gmra.mrb[0].mxu0 %v299
        %v378 = vpop.f32.mrb[0].mxu0
        %v379 = vadd.f32 0.0, %v378
        %v380 = vpop.f32.mrb[0].mxu0
        %381 = vdwg.mxu0
        %v383 = vsel %vm294, %v280, 0
        %v386 = vsel %vm294, %v281, 0
        %v389 = vsel %vm294, %v288, 0
        %v392 = vsel %vm294, %v289, 0
        %394 = vmatprep.subr.mxu0 0.0
        %395 = vmatpush1.xpose.msra.mxu0 %v389
        %396 = vmatprep.subr.mxu0 0.0
        %397 = vmatpush1.xpose.msra.mxu0 %v392
        %398 = vmatprep.subr.mxu0 0.0
        %399 = vmatpush1.xpose.msra.mxu0 0.0
        %400 = vmatprep.subr.mxu0 0.0
        %401 = vmatpush1.xpose.msra.mxu0 0.0
        %402 = vmatprep.subr.mxu0 0.0
        %403 = vmatpush1.xpose.msra.mxu0 0.0
        %404 = vmatprep.subr.mxu0 0.0
        %405 = vmatpush1.xpose.msra.mxu0 0.0
        %406 = vmatprep.subr.mxu0 0.0
        %407 = vmatpush1.xpose.msra.mxu0 0.0
        %408 = vmatprep.subr.mxu0 0.0
        %409 = vmatpush1.xpose.msra.mxu0 0.0
        %410 = vmatprep.subr.mxu0 0.0
        %411 = vmatpush1.xpose.msra.mxu0 0.0
        %412 = vmatprep.subr.mxu0 0.0
        %413 = vmatpush1.xpose.msra.mxu0 0.0
        %414 = vmatprep.subr.mxu0 0.0
        %415 = vmatpush1.xpose.msra.mxu0 0.0
        %416 = vmatprep.subr.mxu0 0.0
        %417 = vmatpush1.xpose.msra.mxu0 0.0
        %418 = vmatprep.subr.mxu0 0.0
        %419 = vmatpush1.xpose.msra.mxu0 0.0
        %420 = vmatprep.subr.mxu0 0.0
        %421 = vmatpush1.xpose.msra.mxu0 0.0
        %422 = vmatprep.subr.mxu0 0.0
        %423 = vmatpush1.xpose.msra.mxu0 0.0
        %424 = vmatprep.subr.mxu0 0.0
        %425 = vmatpush1.xpose.msra.mxu0 0.0
        %426 = vmatprep.subr.mxu0 0.0
        %427 = vmatpush1.xpose.msra.mxu0 0.0
        %428 = vmatprep.subr.mxu0 0.0
        %429 = vmatpush1.xpose.msra.mxu0 0.0
        %430 = vmatprep.subr.mxu0 0.0
        %431 = vmatpush1.xpose.msra.mxu0 0.0
        %432 = vmatprep.subr.mxu0 0.0
        %433 = vmatpush1.xpose.msra.mxu0 0.0
        %434 = vmatprep.subr.mxu0 0.0
        %435 = vmatpush1.xpose.msra.mxu0 0.0
        %436 = vmatprep.subr.mxu0 0.0
        %437 = vmatpush1.xpose.msra.mxu0 0.0
        %438 = vmatprep.subr.mxu0 0.0
        %439 = vmatpush1.xpose.msra.mxu0 0.0
        %440 = vmatprep.subr.mxu0 0.0
        %441 = vmatpush1.xpose.msra.mxu0 0.0
        %442 = vmatprep.subr.mxu0 0.0
        %443 = vmatpush1.xpose.msra.mxu0 0.0
        %444 = vmatprep.subr.mxu0 0.0
        %445 = vmatpush1.xpose.msra.mxu0 0.0
        %446 = vmatprep.subr.mxu0 0.0
        %447 = vmatpush1.xpose.msra.mxu0 0.0
        %448 = vmatprep.subr.mxu0 0.0
        %449 = vmatpush1.xpose.msra.mxu0 0.0
        %450 = vmatprep.subr.mxu0 0.0
        %451 = vmatpush1.xpose.msra.mxu0 0.0
        %452 = vmatprep.subr.mxu0 0.0
        %453 = vmatpush1.xpose.msra.mxu0 0.0
        %454 = vmatprep.subr.mxu0 0.0
        %455 = vmatpush1.xpose.msra.mxu0 0.0
        %456 = vmatprep.subr.mxu0 0.0
        %457 = vmatpush1.xpose.msra.mxu0 0.0
        %458 = vmatprep.mubr.f32.mxu0 0.0
        %459 = vmatmul.mubr.f32.gmra.mrb[0].mxu0 %v383
        %v460 = vpop.f32.mrb[0].mxu0
        %v461 = vadd.f32 0.0, %v460
        %v462 = vpop.f32.mrb[0].mxu0
        %463 = vmatprep.mubr.f32.mxu0 0.0
        %464 = vmatmul.mubr.f32.gmra.mrb[0].mxu0 %v386
        %v465 = vpop.f32.mrb[0].mxu0
        %v466 = vadd.f32 0.0, %v465
        %v467 = vpop.f32.mrb[0].mxu0
        %468 = vdwg.mxu0
        %v470 = vsel %vm294, %v282, 0
        %v473 = vsel %vm294, %v283, 0
        %v476 = vsel %vm294, %v290, 0
        %v479 = vsel %vm294, %v291, 0
        %481 = vmatprep.subr.mxu0 0.0
        %482 = vmatpush1.xpose.msra.mxu0 %v476
        %483 = vmatprep.subr.mxu0 0.0
        %484 = vmatpush1.xpose.msra.mxu0 %v479
        %485 = vmatprep.subr.mxu0 0.0
        %486 = vmatpush1.xpose.msra.mxu0 0.0
        %487 = vmatprep.subr.mxu0 0.0
        %488 = vmatpush1.xpose.msra.mxu0 0.0
        %489 = vmatprep.subr.mxu0 0.0
        %490 = vmatpush1.xpose.msra.mxu0 0.0
        %491 = vmatprep.subr.mxu0 0.0
        %492 = vmatpush1.xpose.msra.mxu0 0.0
        %493 = vmatprep.subr.mxu0 0.0
        %494 = vmatpush1.xpose.msra.mxu0 0.0
        %495 = vmatprep.subr.mxu0 0.0
        %496 = vmatpush1.xpose.msra.mxu0 0.0
        %497 = vmatprep.subr.mxu0 0.0
        %498 = vmatpush1.xpose.msra.mxu0 0.0
        %499 = vmatprep.subr.mxu0 0.0
        %500 = vmatpush1.xpose.msra.mxu0 0.0
        %501 = vmatprep.subr.mxu0 0.0
        %502 = vmatpush1.xpose.msra.mxu0 0.0
        %503 = vmatprep.subr.mxu0 0.0
        %504 = vmatpush1.xpose.msra.mxu0 0.0
        %505 = vmatprep.subr.mxu0 0.0
        %506 = vmatpush1.xpose.msra.mxu0 0.0
        %507 = vmatprep.subr.mxu0 0.0
        %508 = vmatpush1.xpose.msra.mxu0 0.0
        %509 = vmatprep.subr.mxu0 0.0
        %510 = vmatpush1.xpose.msra.mxu0 0.0
        %511 = vmatprep.subr.mxu0 0.0
        %512 = vmatpush1.xpose.msra.mxu0 0.0
        %513 = vmatprep.subr.mxu0 0.0
        %514 = vmatpush1.xpose.msra.mxu0 0.0
        %515 = vmatprep.subr.mxu0 0.0
        %516 = vmatpush1.xpose.msra.mxu0 0.0
        %517 = vmatprep.subr.mxu0 0.0
        %518 = vmatpush1.xpose.msra.mxu0 0.0
        %519 = vmatprep.subr.mxu0 0.0
        %520 = vmatpush1.xpose.msra.mxu0 0.0
        %521 = vmatprep.subr.mxu0 0.0
        %522 = vmatpush1.xpose.msra.mxu0 0.0
        %523 = vmatprep.subr.mxu0 0.0
        %524 = vmatpush1.xpose.msra.mxu0 0.0
        %525 = vmatprep.subr.mxu0 0.0
        %526 = vmatpush1.xpose.msra.mxu0 0.0
        %527 = vmatprep.subr.mxu0 0.0
        %528 = vmatpush1.xpose.msra.mxu0 0.0
        %529 = vmatprep.subr.mxu0 0.0
        %530 = vmatpush1.xpose.msra.mxu0 0.0
        %531 = vmatprep.subr.mxu0 0.0
        %532 = vmatpush1.xpose.msra.mxu0 0.0
        %533 = vmatprep.subr.mxu0 0.0
        %534 = vmatpush1.xpose.msra.mxu0 0.0
        %535 = vmatprep.subr.mxu0 0.0
        %536 = vmatpush1.xpose.msra.mxu0 0.0
        %537 = vmatprep.subr.mxu0 0.0
        %538 = vmatpush1.xpose.msra.mxu0 0.0
        %539 = vmatprep.subr.mxu0 0.0
        %540 = vmatpush1.xpose.msra.mxu0 0.0
        %541 = vmatprep.subr.mxu0 0.0
        %542 = vmatpush1.xpose.msra.mxu0 0.0
        %543 = vmatprep.subr.mxu0 0.0
        %544 = vmatpush1.xpose.msra.mxu0 0.0
        %545 = vmatprep.mubr.f32.mxu0 0.0
        %546 = vmatmul.mubr.f32.gmra.mrb[0].mxu0 %v470
        %v547 = vpop.f32.mrb[0].mxu0
        %v548 = vadd.f32 0.0, %v547
        %v549 = vpop.f32.mrb[0].mxu0
        %550 = vmatprep.mubr.f32.mxu0 0.0
        %551 = vmatmul.mubr.f32.gmra.mrb[0].mxu0 %v473
        %v552 = vpop.f32.mrb[0].mxu0
        %v553 = vadd.f32 0.0, %v552
        %v554 = vpop.f32.mrb[0].mxu0
        %555 = vdwg.mxu0
        %v557 = vsel %vm294, %v284, 0
        %v560 = vsel %vm294, %v285, 0
        %v563 = vsel %vm294, %v292, 0
        %v566 = vsel %vm294, %v293, 0
        %568 = vmatprep.subr.mxu0 0.0
        %569 = vmatpush1.xpose.msra.mxu0 %v563
        %570 = vmatprep.subr.mxu0 0.0
        %571 = vmatpush1.xpose.msra.mxu0 %v566
        %572 = vmatprep.subr.mxu0 0.0
        %573 = vmatpush1.xpose.msra.mxu0 0.0
        %574 = vmatprep.subr.mxu0 0.0
        %575 = vmatpush1.xpose.msra.mxu0 0.0
        %576 = vmatprep.subr.mxu0 0.0
        %577 = vmatpush1.xpose.msra.mxu0 0.0
        %578 = vmatprep.subr.mxu0 0.0
        %579 = vmatpush1.xpose.msra.mxu0 0.0
        %580 = vmatprep.subr.mxu0 0.0
        %581 = vmatpush1.xpose.msra.mxu0 0.0
        %582 = vmatprep.subr.mxu0 0.0
        %583 = vmatpush1.xpose.msra.mxu0 0.0
        %584 = vmatprep.subr.mxu0 0.0
        %585 = vmatpush1.xpose.msra.mxu0 0.0
        %586 = vmatprep.subr.mxu0 0.0
        %587 = vmatpush1.xpose.msra.mxu0 0.0
        %588 = vmatprep.subr.mxu0 0.0
        %589 = vmatpush1.xpose.msra.mxu0 0.0
        %590 = vmatprep.subr.mxu0 0.0
        %591 = vmatpush1.xpose.msra.mxu0 0.0
        %592 = vmatprep.subr.mxu0 0.0
        %593 = vmatpush1.xpose.msra.mxu0 0.0
        %594 = vmatprep.subr.mxu0 0.0
        %595 = vmatpush1.xpose.msra.mxu0 0.0
        %596 = vmatprep.subr.mxu0 0.0
        %597 = vmatpush1.xpose.msra.mxu0 0.0
        %598 = vmatprep.subr.mxu0 0.0
        %599 = vmatpush1.xpose.msra.mxu0 0.0
        %600 = vmatprep.subr.mxu0 0.0
        %601 = vmatpush1.xpose.msra.mxu0 0.0
        %602 = vmatprep.subr.mxu0 0.0
        %603 = vmatpush1.xpose.msra.mxu0 0.0
        %604 = vmatprep.subr.mxu0 0.0
        %605 = vmatpush1.xpose.msra.mxu0 0.0
        %606 = vmatprep.subr.mxu0 0.0
        %607 = vmatpush1.xpose.msra.mxu0 0.0
        %608 = vmatprep.subr.mxu0 0.0
        %609 = vmatpush1.xpose.msra.mxu0 0.0
        %610 = vmatprep.subr.mxu0 0.0
        %611 = vmatpush1.xpose.msra.mxu0 0.0
        %612 = vmatprep.subr.mxu0 0.0
        %613 = vmatpush1.xpose.msra.mxu0 0.0
        %614 = vmatprep.subr.mxu0 0.0
        %615 = vmatpush1.xpose.msra.mxu0 0.0
        %616 = vmatprep.subr.mxu0 0.0
        %617 = vmatpush1.xpose.msra.mxu0 0.0
        %618 = vmatprep.subr.mxu0 0.0
        %619 = vmatpush1.xpose.msra.mxu0 0.0
        %620 = vmatprep.subr.mxu0 0.0
        %621 = vmatpush1.xpose.msra.mxu0 0.0
        %622 = vmatprep.subr.mxu0 0.0
        %623 = vmatpush1.xpose.msra.mxu0 0.0
        %624 = vmatprep.subr.mxu0 0.0
        %625 = vmatpush1.xpose.msra.mxu0 0.0
        %626 = vmatprep.subr.mxu0 0.0
        %627 = vmatpush1.xpose.msra.mxu0 0.0
        %628 = vmatprep.subr.mxu0 0.0
        %629 = vmatpush1.xpose.msra.mxu0 0.0
        %630 = vmatprep.subr.mxu0 0.0
        %631 = vmatpush1.xpose.msra.mxu0 0.0
        %632 = vmatprep.mubr.f32.mxu0 0.0
        %633 = vmatmul.mubr.f32.gmra.mrb[0].mxu0 %v557
        %v634 = vpop.f32.mrb[0].mxu0
        %v635 = vadd.f32 0.0, %v634
        %v636 = vpop.f32.mrb[0].mxu0
        %637 = vmatprep.mubr.f32.mxu0 0.0
        %638 = vmatmul.mubr.f32.gmra.mrb[0].mxu0 %v560
        %v639 = vpop.f32.mrb[0].mxu0
        %v640 = vadd.f32 0.0, %v639
        %v641 = vpop.f32.mrb[0].mxu0
        %642 = vdwg.mxu0
        %v643 = vmul.f32 %v374, 0.17677669
        %v644 = vmul.f32 %v379, 0.17677669
        %v645 = vmul.f32 %v461, 0.17677669
        %v646 = vmul.f32 %v466, 0.17677669
        %v647 = vmul.f32 %v548, 0.17677669
        %v648 = vmul.f32 %v553, 0.17677669
        %v649 = vmul.f32 %v635, 0.17677669
        %v650 = vmul.f32 %v640, 0.17677669
        %v651 = vlaneseq
        %v652 = vand.u32 %v651, 127
        %s653 = smul.u32 %s28, 4
        %s654 = sld [smem:[#allocation3 + %s653]]
        %v655 = vstv %s654
        %vm656 = vcmp.lt.s32.totalorder %v652, %v655
        %v657 = vsel %vm656, %v643, 0.0
        %v658 = vsel %vm656, %v644, 0.0
        %s659 = sadd.s32 %s653, 1
        %s660 = sld [smem:[#allocation3 + %s659]]
        %v661 = vstv %s660
        %vm662 = vcmp.lt.s32.totalorder %v652, %v661
        %v663 = vsel %vm662, %v645, 0.0
        %v664 = vsel %vm662, %v646, 0.0
        %s665 = sadd.s32 %s653, 2
        %s666 = sld [smem:[#allocation3 + %s665]]
        %v667 = vstv %s666
        %vm668 = vcmp.lt.s32.totalorder %v652, %v667
        %v669 = vsel %vm668, %v647, 0.0
        %v670 = vsel %vm668, %v648, 0.0
        %s671 = sadd.s32 %s653, 3
        %s672 = sld [smem:[#allocation3 + %s671]]
        %v673 = vstv %s672
        %vm674 = vcmp.lt.s32.totalorder %v652, %v673
        %v675 = vsel %vm674, %v649, 0.0
        %v676 = vsel %vm674, %v650, 0.0
        %v677 = vld [vmem:[%s241] sm:$0xff]
        %v678 = vld [vmem:[%s241 + $0x8] sm:$0xff]
        %v679 = vld [vmem:[%s241 + $0x10] sm:$0xff]
        %v680 = vld [vmem:[%s241 + $0x18] sm:$0xff]
        %v681 = vld [vmem:[%s241 + $0x20] sm:$0xff]
        %v682 = vld [vmem:[%s241 + $0x28] sm:$0xff]
        %v683 = vld [vmem:[%s241 + $0x30] sm:$0xff]
        %v684 = vld [vmem:[%s241 + $0x38] sm:$0xff]
        %vm685 = vcmask 130048
        %v686 = vsel %vm685, %v657, -inf
        %687 = vmax.xlane.f32.xlu0 %v686
        %v688 = vpop.xlane.xlu0 %687
        %v689 = vsel %vm685, %v658, -inf
        %690 = vmax.xlane.f32.xlu0 %v689
        %v691 = vpop.xlane.xlu0 %690
        %v692 = vsel %vm685, %v663, -inf
        %693 = vmax.xlane.f32.xlu0 %v692
        %v694 = vpop.xlane.xlu0 %693
        %v695 = vsel %vm685, %v664, -inf
        %696 = vmax.xlane.f32.xlu0 %v695
        %v697 = vpop.xlane.xlu0 %696
        %v698 = vsel %vm685, %v669, -inf
        %699 = vmax.xlane.f32.xlu0 %v698
        %v700 = vpop.xlane.xlu0 %699
        %v701 = vsel %vm685, %v670, -inf
        %702 = vmax.xlane.f32.xlu0 %v701
        %v703 = vpop.xlane.xlu0 %702
        %v704 = vsel %vm685, %v675, -inf
        %705 = vmax.xlane.f32.xlu0 %v704
        %v706 = vpop.xlane.xlu0 %705
        %v707 = vsel %vm685, %v676, -inf
        %708 = vmax.xlane.f32.xlu0 %v707
        %v709 = vpop.xlane.xlu0 %708
        %v710 = vsub.f32 %v657, %v688
        %v711 = vsub.f32 %v658, %v691
        %v712 = vsub.f32 %v663, %v694
        %v713 = vsub.f32 %v664, %v697
        %v714 = vsub.f32 %v669, %v700
        %v715 = vsub.f32 %v670, %v703
        %v716 = vsub.f32 %v675, %v706
        %v717 = vsub.f32 %v676, %v709
        %v718 = vmul.f32 %v710, 1.442695
        %v719 = vpow.pop %v718
        %v720 = vmul.f32 %v711, 1.442695
        %v721 = vpow.pop %v720
        %v722 = vmul.f32 %v712, 1.442695
        %v723 = vpow.pop %v722
        %v724 = vmul.f32 %v713, 1.442695
        %v725 = vpow.pop %v724
        %v726 = vmul.f32 %v714, 1.442695
        %v727 = vpow.pop %v726
        %v728 = vmul.f32 %v715, 1.442695
        %v729 = vpow.pop %v728
        %v730 = vmul.f32 %v716, 1.442695
        %v731 = vpow.pop %v730
        %v732 = vmul.f32 %v717, 1.442695
        %v733 = vpow.pop %v732
        %v734 = vsel %vm685, %v719, 0.0
        %735 = vadd.xlane.f32.xlu0 %v734
        %v736 = vpop.xlane.xlu0 %735
        %v737 = vsel %vm685, %v721, 0.0
        %738 = vadd.xlane.f32.xlu0 %v737
        %v739 = vpop.xlane.xlu0 %738
        %v740 = vsel %vm685, %v723, 0.0
        %741 = vadd.xlane.f32.xlu0 %v740
        %v742 = vpop.xlane.xlu0 %741
        %v743 = vsel %vm685, %v725, 0.0
        %744 = vadd.xlane.f32.xlu0 %v743
        %v745 = vpop.xlane.xlu0 %744
        %v746 = vsel %vm685, %v727, 0.0
        %747 = vadd.xlane.f32.xlu0 %v746
        %v748 = vpop.xlane.xlu0 %747
        %v749 = vsel %vm685, %v729, 0.0
        %750 = vadd.xlane.f32.xlu0 %v749
        %v751 = vpop.xlane.xlu0 %750
        %v752 = vsel %vm685, %v731, 0.0
        %753 = vadd.xlane.f32.xlu0 %v752
        %v754 = vpop.xlane.xlu0 %753
        %v755 = vsel %vm685, %v733, 0.0
        %756 = vadd.xlane.f32.xlu0 %v755
        %v757 = vpop.xlane.xlu0 %756
        %v758 = vrcp.pop %v736
        %v759 = vrcp.pop %v739
        %v760 = vrcp.pop %v742
        %v761 = vrcp.pop %v745
        %v762 = vrcp.pop %v748
        %v763 = vrcp.pop %v751
        %v764 = vrcp.pop %v754
        %v765 = vrcp.pop %v757
        %v766 = vmul.f32 %v736, %v758
        %v767 = vmul.f32 %v739, %v759
        %v768 = vmul.f32 %v742, %v760
        %v769 = vmul.f32 %v745, %v761
        %v770 = vmul.f32 %v748, %v762
        %v771 = vmul.f32 %v751, %v763
        %v772 = vmul.f32 %v754, %v764
        %v773 = vmul.f32 %v757, %v765
        %v774 = vsub.f32 2.0, %v766
        %v775 = vsub.f32 2.0, %v767
        %v776 = vsub.f32 2.0, %v768
        %v777 = vsub.f32 2.0, %v769
        %v778 = vsub.f32 2.0, %v770
        %v779 = vsub.f32 2.0, %v771
        %v780 = vsub.f32 2.0, %v772
        %v781 = vsub.f32 2.0, %v773
        %v782 = vmul.f32 %v758, %v774
        %v783 = vmul.f32 %v759, %v775
        %v784 = vmul.f32 %v760, %v776
        %v785 = vmul.f32 %v761, %v777
        %v786 = vmul.f32 %v762, %v778
        %v787 = vmul.f32 %v763, %v779
        %v788 = vmul.f32 %v764, %v780
        %v789 = vmul.f32 %v765, %v781
        %v790 = vmul.f32 %v719, %v782
        %v791 = vmul.f32 %v721, %v783
        %v792 = vmul.f32 %v723, %v784
        %v793 = vmul.f32 %v725, %v785
        %v794 = vmul.f32 %v727, %v786
        %v795 = vmul.f32 %v729, %v787
        %v796 = vmul.f32 %v731, %v788
        %v797 = vmul.f32 %v733, %v789
        %v799 = vsel %vm685, %v790, 0
        %v802 = vsel %vm685, %v791, 0
        %804 = vmatprep.subr.mxu0 0.0
        %805 = vmatpush1.msra.mxu0 %v677
        %806 = vmatprep.subr.mxu0 0.0
        %807 = vmatpush1.msra.mxu0 %v678
        %808 = vmatprep.subr.mxu0 0.0
        %809 = vmatpush1.msra.mxu0 0.0
        %810 = vmatprep.subr.mxu0 0.0
        %811 = vmatpush1.msra.mxu0 0.0
        %812 = vmatprep.subr.mxu0 0.0
        %813 = vmatpush1.msra.mxu0 0.0
        %814 = vmatprep.subr.mxu0 0.0
        %815 = vmatpush1.msra.mxu0 0.0
        %816 = vmatprep.subr.mxu0 0.0
        %817 = vmatpush1.msra.mxu0 0.0
        %818 = vmatprep.subr.mxu0 0.0
        %819 = vmatpush1.msra.mxu0 0.0
        %820 = vmatprep.subr.mxu0 0.0
        %821 = vmatpush1.msra.mxu0 0.0
        %822 = vmatprep.subr.mxu0 0.0
        %823 = vmatpush1.msra.mxu0 0.0
        %824 = vmatprep.subr.mxu0 0.0
        %825 = vmatpush1.msra.mxu0 0.0
        %826 = vmatprep.subr.mxu0 0.0
        %827 = vmatpush1.msra.mxu0 0.0
        %828 = vmatprep.subr.mxu0 0.0
        %829 = vmatpush1.msra.mxu0 0.0
        %830 = vmatprep.subr.mxu0 0.0
        %831 = vmatpush1.msra.mxu0 0.0
        %832 = vmatprep.subr.mxu0 0.0
        %833 = vmatpush1.msra.mxu0 0.0
        %834 = vmatprep.subr.mxu0 0.0
        %835 = vmatpush1.msra.mxu0 0.0
        %836 = vmatprep.subr.mxu0 0.0
        %837 = vmatpush1.msra.mxu0 0.0
        %838 = vmatprep.subr.mxu0 0.0
        %839 = vmatpush1.msra.mxu0 0.0
        %840 = vmatprep.subr.mxu0 0.0
        %841 = vmatpush1.msra.mxu0 0.0
        %842 = vmatprep.subr.mxu0 0.0
        %843 = vmatpush1.msra.mxu0 0.0
        %844 = vmatprep.subr.mxu0 0.0
        %845 = vmatpush1.msra.mxu0 0.0
        %846 = vmatprep.subr.mxu0 0.0
        %847 = vmatpush1.msra.mxu0 0.0
        %848 = vmatprep.subr.mxu0 0.0
        %849 = vmatpush1.msra.mxu0 0.0
        %850 = vmatprep.subr.mxu0 0.0
        %851 = vmatpush1.msra.mxu0 0.0
        %852 = vmatprep.subr.mxu0 0.0
        %853 = vmatpush1.msra.mxu0 0.0
        %854 = vmatprep.subr.mxu0 0.0
        %855 = vmatpush1.msra.mxu0 0.0
        %856 = vmatprep.subr.mxu0 0.0
        %857 = vmatpush1.msra.mxu0 0.0
        %858 = vmatprep.subr.mxu0 0.0
        %859 = vmatpush1.msra.mxu0 0.0
        %860 = vmatprep.subr.mxu0 0.0
        %861 = vmatpush1.msra.mxu0 0.0
        %862 = vmatprep.subr.mxu0 0.0
        %863 = vmatpush1.msra.mxu0 0.0
        %864 = vmatprep.subr.mxu0 0.0
        %865 = vmatpush1.msra.mxu0 0.0
        %866 = vmatprep.subr.mxu0 0.0
        %867 = vmatpush1.msra.mxu0 0.0
        %868 = vmatprep.mubr.f32.mxu0 0.0
        %869 = vmatmul.mubr.f32.gmra.mrb[0].mxu0 %v799
        %v870 = vpop.f32.mrb[0].mxu0
        %v871 = vadd.f32 0.0, %v870
        %v872 = vpop.f32.mrb[0].mxu0
        %873 = vmatprep.mubr.f32.mxu0 0.0
        %874 = vmatmul.mubr.f32.gmra.mrb[0].mxu0 %v802
        %v875 = vpop.f32.mrb[0].mxu0
        %v876 = vadd.f32 0.0, %v875
        %v877 = vpop.f32.mrb[0].mxu0
        %878 = vdwg.mxu0
        %v880 = vsel %vm685, %v792, 0
        %v883 = vsel %vm685, %v793, 0
        %885 = vmatprep.subr.mxu0 0.0
        %886 = vmatpush1.msra.mxu0 %v679
        %887 = vmatprep.subr.mxu0 0.0
        %888 = vmatpush1.msra.mxu0 %v680
        %889 = vmatprep.subr.mxu0 0.0
        %890 = vmatpush1.msra.mxu0 0.0
        %891 = vmatprep.subr.mxu0 0.0
        %892 = vmatpush1.msra.mxu0 0.0
        %893 = vmatprep.subr.mxu0 0.0
        %894 = vmatpush1.msra.mxu0 0.0
        %895 = vmatprep.subr.mxu0 0.0
        %896 = vmatpush1.msra.mxu0 0.0
        %897 = vmatprep.subr.mxu0 0.0
        %898 = vmatpush1.msra.mxu0 0.0
        %899 = vmatprep.subr.mxu0 0.0
        %900 = vmatpush1.msra.mxu0 0.0
        %901 = vmatprep.subr.mxu0 0.0
        %902 = vmatpush1.msra.mxu0 0.0
        %903 = vmatprep.subr.mxu0 0.0
        %904 = vmatpush1.msra.mxu0 0.0
        %905 = vmatprep.subr.mxu0 0.0
        %906 = vmatpush1.msra.mxu0 0.0
        %907 = vmatprep.subr.mxu0 0.0
        %908 = vmatpush1.msra.mxu0 0.0
        %909 = vmatprep.subr.mxu0 0.0
        %910 = vmatpush1.msra.mxu0 0.0
        %911 = vmatprep.subr.mxu0 0.0
        %912 = vmatpush1.msra.mxu0 0.0
        %913 = vmatprep.subr.mxu0 0.0
        %914 = vmatpush1.msra.mxu0 0.0
        %915 = vmatprep.subr.mxu0 0.0
        %916 = vmatpush1.msra.mxu0 0.0
        %917 = vmatprep.subr.mxu0 0.0
        %918 = vmatpush1.msra.mxu0 0.0
        %919 = vmatprep.subr.mxu0 0.0
        %920 = vmatpush1.msra.mxu0 0.0
        %921 = vmatprep.subr.mxu0 0.0
        %922 = vmatpush1.msra.mxu0 0.0
        %923 = vmatprep.subr.mxu0 0.0
        %924 = vmatpush1.msra.mxu0 0.0
        %925 = vmatprep.subr.mxu0 0.0
        %926 = vmatpush1.msra.mxu0 0.0
        %927 = vmatprep.subr.mxu0 0.0
        %928 = vmatpush1.msra.mxu0 0.0
        %929 = vmatprep.subr.mxu0 0.0
        %930 = vmatpush1.msra.mxu0 0.0
        %931 = vmatprep.subr.mxu0 0.0
        %932 = vmatpush1.msra.mxu0 0.0
        %933 = vmatprep.subr.mxu0 0.0
        %934 = vmatpush1.msra.mxu0 0.0
        %935 = vmatprep.subr.mxu0 0.0
        %936 = vmatpush1.msra.mxu0 0.0
        %937 = vmatprep.subr.mxu0 0.0
        %938 = vmatpush1.msra.mxu0 0.0
        %939 = vmatprep.subr.mxu0 0.0
        %940 = vmatpush1.msra.mxu0 0.0
        %941 = vmatprep.subr.mxu0 0.0
        %942 = vmatpush1.msra.mxu0 0.0
        %943 = vmatprep.subr.mxu0 0.0
        %944 = vmatpush1.msra.mxu0 0.0
        %945 = vmatprep.subr.mxu0 0.0
        %946 = vmatpush1.msra.mxu0 0.0
        %947 = vmatprep.subr.mxu0 0.0
        %948 = vmatpush1.msra.mxu0 0.0
        %949 = vmatprep.mubr.f32.mxu0 0.0
        %950 = vmatmul.mubr.f32.gmra.mrb[0].mxu0 %v880
        %v951 = vpop.f32.mrb[0].mxu0
        %v952 = vadd.f32 0.0, %v951
        %v953 = vpop.f32.mrb[0].mxu0
        %954 = vmatprep.mubr.f32.mxu0 0.0
        %955 = vmatmul.mubr.f32.gmra.mrb[0].mxu0 %v883
        %v956 = vpop.f32.mrb[0].mxu0
        %v957 = vadd.f32 0.0, %v956
        %v958 = vpop.f32.mrb[0].mxu0
        %959 = vdwg.mxu0
        %v961 = vsel %vm685, %v794, 0
        %v964 = vsel %vm685, %v795, 0
        %966 = vmatprep.subr.mxu0 0.0
        %967 = vmatpush1.msra.mxu0 %v681
        %968 = vmatprep.subr.mxu0 0.0
        %969 = vmatpush1.msra.mxu0 %v682
        %970 = vmatprep.subr.mxu0 0.0
        %971 = vmatpush1.msra.mxu0 0.0
        %972 = vmatprep.subr.mxu0 0.0
        %973 = vmatpush1.msra.mxu0 0.0
        %974 = vmatprep.subr.mxu0 0.0
        %975 = vmatpush1.msra.mxu0 0.0
        %976 = vmatprep.subr.mxu0 0.0
        %977 = vmatpush1.msra.mxu0 0.0
        %978 = vmatprep.subr.mxu0 0.0
        %979 = vmatpush1.msra.mxu0 0.0
        %980 = vmatprep.subr.mxu0 0.0
        %981 = vmatpush1.msra.mxu0 0.0
        %982 = vmatprep.subr.mxu0 0.0
        %983 = vmatpush1.msra.mxu0 0.0
        %984 = vmatprep.subr.mxu0 0.0
        %985 = vmatpush1.msra.mxu0 0.0
        %986 = vmatprep.subr.mxu0 0.0
        %987 = vmatpush1.msra.mxu0 0.0
        %988 = vmatprep.subr.mxu0 0.0
        %989 = vmatpush1.msra.mxu0 0.0
        %990 = vmatprep.subr.mxu0 0.0
        %991 = vmatpush1.msra.mxu0 0.0
        %992 = vmatprep.subr.mxu0 0.0
        %993 = vmatpush1.msra.mxu0 0.0
        %994 = vmatprep.subr.mxu0 0.0
        %995 = vmatpush1.msra.mxu0 0.0
        %996 = vmatprep.subr.mxu0 0.0
        %997 = vmatpush1.msra.mxu0 0.0
        %998 = vmatprep.subr.mxu0 0.0
        %999 = vmatpush1.msra.mxu0 0.0
        %1000 = vmatprep.subr.mxu0 0.0
        %1001 = vmatpush1.msra.mxu0 0.0
        %1002 = vmatprep.subr.mxu0 0.0
        %1003 = vmatpush1.msra.mxu0 0.0
        %1004 = vmatprep.subr.mxu0 0.0
        %1005 = vmatpush1.msra.mxu0 0.0
        %1006 = vmatprep.subr.mxu0 0.0
        %1007 = vmatpush1.msra.mxu0 0.0
        %1008 = vmatprep.subr.mxu0 0.0
        %1009 = vmatpush1.msra.mxu0 0.0
        %1010 = vmatprep.subr.mxu0 0.0
        %1011 = vmatpush1.msra.mxu0 0.0
        %1012 = vmatprep.subr.mxu0 0.0
        %1013 = vmatpush1.msra.mxu0 0.0
        %1014 = vmatprep.subr.mxu0 0.0
        %1015 = vmatpush1.msra.mxu0 0.0
        %1016 = vmatprep.subr.mxu0 0.0
        %1017 = vmatpush1.msra.mxu0 0.0
        %1018 = vmatprep.subr.mxu0 0.0
        %1019 = vmatpush1.msra.mxu0 0.0
        %1020 = vmatprep.subr.mxu0 0.0
        %1021 = vmatpush1.msra.mxu0 0.0
        %1022 = vmatprep.subr.mxu0 0.0
        %1023 = vmatpush1.msra.mxu0 0.0
        %1024 = vmatprep.subr.mxu0 0.0
        %1025 = vmatpush1.msra.mxu0 0.0
        %1026 = vmatprep.subr.mxu0 0.0
        %1027 = vmatpush1.msra.mxu0 0.0
        %1028 = vmatprep.subr.mxu0 0.0
        %1029 = vmatpush1.msra.mxu0 0.0
        %1030 = vmatprep.mubr.f32.mxu0 0.0
        %1031 = vmatmul.mubr.f32.gmra.mrb[0].mxu0 %v961
        %v1032 = vpop.f32.mrb[0].mxu0
        %v1033 = vadd.f32 0.0, %v1032
        %v1034 = vpop.f32.mrb[0].mxu0
        %1035 = vmatprep.mubr.f32.mxu0 0.0
        %1036 = vmatmul.mubr.f32.gmra.mrb[0].mxu0 %v964
        %v1037 = vpop.f32.mrb[0].mxu0
        %v1038 = vadd.f32 0.0, %v1037
        %v1039 = vpop.f32.mrb[0].mxu0
        %1040 = vdwg.mxu0
        %v1042 = vsel %vm685, %v796, 0
        %v1045 = vsel %vm685, %v797, 0
        %1047 = vmatprep.subr.mxu0 0.0
        %1048 = vmatpush1.msra.mxu0 %v683
        %1049 = vmatprep.subr.mxu0 0.0
        %1050 = vmatpush1.msra.mxu0 %v684
        %1051 = vmatprep.subr.mxu0 0.0
        %1052 = vmatpush1.msra.mxu0 0.0
        %1053 = vmatprep.subr.mxu0 0.0
        %1054 = vmatpush1.msra.mxu0 0.0
        %1055 = vmatprep.subr.mxu0 0.0
        %1056 = vmatpush1.msra.mxu0 0.0
        %1057 = vmatprep.subr.mxu0 0.0
        %1058 = vmatpush1.msra.mxu0 0.0
        %1059 = vmatprep.subr.mxu0 0.0
        %1060 = vmatpush1.msra.mxu0 0.0
        %1061 = vmatprep.subr.mxu0 0.0
        %1062 = vmatpush1.msra.mxu0 0.0
        %1063 = vmatprep.subr.mxu0 0.0
        %1064 = vmatpush1.msra.mxu0 0.0
        %1065 = vmatprep.subr.mxu0 0.0
        %1066 = vmatpush1.msra.mxu0 0.0
        %1067 = vmatprep.subr.mxu0 0.0
        %1068 = vmatpush1.msra.mxu0 0.0
        %1069 = vmatprep.subr.mxu0 0.0
        %1070 = vmatpush1.msra.mxu0 0.0
        %1071 = vmatprep.subr.mxu0 0.0
        %1072 = vmatpush1.msra.mxu0 0.0
        %1073 = vmatprep.subr.mxu0 0.0
        %1074 = vmatpush1.msra.mxu0 0.0
        %1075 = vmatprep.subr.mxu0 0.0
        %1076 = vmatpush1.msra.mxu0 0.0
        %1077 = vmatprep.subr.mxu0 0.0
        %1078 = vmatpush1.msra.mxu0 0.0
        %1079 = vmatprep.subr.mxu0 0.0
        %1080 = vmatpush1.msra.mxu0 0.0
        %1081 = vmatprep.subr.mxu0 0.0
        %1082 = vmatpush1.msra.mxu0 0.0
        %1083 = vmatprep.subr.mxu0 0.0
        %1084 = vmatpush1.msra.mxu0 0.0
        %1085 = vmatprep.subr.mxu0 0.0
        %1086 = vmatpush1.msra.mxu0 0.0
        %1087 = vmatprep.subr.mxu0 0.0
        %1088 = vmatpush1.msra.mxu0 0.0
        %1089 = vmatprep.subr.mxu0 0.0
        %1090 = vmatpush1.msra.mxu0 0.0
        %1091 = vmatprep.subr.mxu0 0.0
        %1092 = vmatpush1.msra.mxu0 0.0
        %1093 = vmatprep.subr.mxu0 0.0
        %1094 = vmatpush1.msra.mxu0 0.0
        %1095 = vmatprep.subr.mxu0 0.0
        %1096 = vmatpush1.msra.mxu0 0.0
        %1097 = vmatprep.subr.mxu0 0.0
        %1098 = vmatpush1.msra.mxu0 0.0
        %1099 = vmatprep.subr.mxu0 0.0
        %1100 = vmatpush1.msra.mxu0 0.0
        %1101 = vmatprep.subr.mxu0 0.0
        %1102 = vmatpush1.msra.mxu0 0.0
        %1103 = vmatprep.subr.mxu0 0.0
        %1104 = vmatpush1.msra.mxu0 0.0
        %1105 = vmatprep.subr.mxu0 0.0
        %1106 = vmatpush1.msra.mxu0 0.0
        %1107 = vmatprep.subr.mxu0 0.0
        %1108 = vmatpush1.msra.mxu0 0.0
        %1109 = vmatprep.subr.mxu0 0.0
        %1110 = vmatpush1.msra.mxu0 0.0
        %1111 = vmatprep.mubr.f32.mxu0 0.0
        %1112 = vmatmul.mubr.f32.gmra.mrb[0].mxu0 %v1042
        %v1113 = vpop.f32.mrb[0].mxu0
        %v1114 = vadd.f32 0.0, %v1113
        %v1115 = vpop.f32.mrb[0].mxu0
        %1116 = vmatprep.mubr.f32.mxu0 0.0
        %1117 = vmatmul.mubr.f32.gmra.mrb[0].mxu0 %v1045
        %v1118 = vpop.f32.mrb[0].mxu0
        %v1119 = vadd.f32 0.0, %v1118
        %v1120 = vpop.f32.mrb[0].mxu0
        %1121 = vdwg.mxu0
        %1122 = vst.msk [vmem:[%s273] sm:$0xff] %vm294, %v871
        %1123 = vst.msk [vmem:[%s273 + $0x8] sm:$0xff] %vm294, %v876
        %1124 = vst.msk [vmem:[%s273 + $0x10] sm:$0xff] %vm294, %v952
        %1125 = vst.msk [vmem:[%s273 + $0x18] sm:$0xff] %vm294, %v957
        %1126 = vst.msk [vmem:[%s273 + $0x20] sm:$0xff] %vm294, %v1033
        %1127 = vst.msk [vmem:[%s273 + $0x28] sm:$0xff] %vm294, %v1038
        %1128 = vst.msk [vmem:[%s273 + $0x30] sm:$0xff] %vm294, %v1114
        %1129 = vst.msk [vmem:[%s273 + $0x38] sm:$0xff] %vm294, %v1119
        %s1130 = sand.u32 %s114, 1
        %s1131 = scalar_lea.sflag [#allocation6], %s1130
        %s1132 = sand.u32 %s114, 1
        %s1133 = smul.addr %s1132, 64
        %s1134 = scalar_lea.vmem [#allocation10], %s1133
        // Predicated region
        $region45: #{tpu_custom_call.1} parent=31 // pred_check
          %p1135 = pneg %p124
        $region46: #{tpu_custom_call.1} parent=31 // pred_check_branch
          %1137 = sbr.rel (%p1135) target = $region48
        $region47: #{tpu_custom_call.1} parent=31 // pred_region
          %s1138 = smul.u32 4, %s28
          %s1140 = ssub.s32 1024, 1024
          %1141 = vsyncadd %s1131, %s1140
          %s1142 = smul.addr %s1138, 2
          %s1143 = smul.addr %s1142, 128
          %s1144 = scalar_lea.hbm %s4, %s1143
          %s1145 = sshll.u32 %s1134, 4
          %s1146 = int_to_ptr.vmem [resolvable:$true] %s1145
          %1151 = dma.vmem_to_hbm [thread:$0]  %s1146, 1024, %s1144, %s1131, 128, 128, 8
        $region48: #{tpu_custom_call.1} parent=31 // pred_fallthru
          _
      $region32: #{tpu_custom_call.1} parent=5 // pred_fallthru
        _
      %p1152 = scmp.le.s32.totalorder 2, %s23
      // Predicated region
      $region49: #{tpu_custom_call.1} parent=5 // pred_check
        %p1153 = pneg %p1152
      $region50: #{tpu_custom_call.1} parent=5 // pred_check_branch
        %1155 = sbr.rel (%p1153) target = $region52
      $region51: #{tpu_custom_call.1} parent=5 // pred_region
        %s1156 = ssub.s32 %s23, 2
        // Predicated region
        $region53: #{tpu_custom_call.1} parent=51 // pred_check
          %p1157 = pneg %p130
        $region54: #{tpu_custom_call.1} parent=51 // pred_check_branch
          %1159 = sbr.rel (%p1157) target = $region56
        $region55: #{tpu_custom_call.1} parent=51 // pred_region
          %s1160 = sand.u32 %s115, 1
          %s1161 = scalar_lea.sflag [#allocation6], %s1160
          %s1162 = sand.u32 %s115, 1
          %s1163 = smul.addr %s1162, 64
          %s1164 = scalar_lea.vmem [#allocation10], %s1163
          %1165 = dma.done %s1161, 1024
        $region56: #{tpu_custom_call.1} parent=51 // pred_fallthru
          _
      $region52: #{tpu_custom_call.1} parent=5 // pred_fallthru
        _
    $region6: #{tpu_custom_call.1} parent=1 // loop_footer
      %s27 = sadd.s32 1, %s23
    $region7: #{tpu_custom_call.1} parent=1 // loop_footer_branch
      %22 = sbr.rel target = $region3
    $region8: #{tpu_custom_call.1} parent=1 // loop_exit
      _
    %1166 = vsyncpa [#allocation5], 1
    %s1167 = scalar_lea.sflag [#allocation5], 1
    %1168 = vsyncpa %s1167, 1
    %1169 = vsyncpa [#allocation8], 1
    %s1170 = scalar_lea.sflag [#allocation8], 1
    %1171 = vsyncpa %s1170, 1
    %1172 = vsyncpa [#allocation6], 1
    %s1173 = scalar_lea.sflag [#allocation6], 1
    %1174 = vsyncpa %s1173, 1

</llo_original>
